<compile_context>
chip_gen: v5e
topology: v5e:2x2
jax: 0.10.0
libtpu: 0.0.40
codegen_flags: <defaults>
</compile_context>

<pallas_src>
import jax
import jax.numpy as jnp
from jax.experimental import pallas as pl
from jax.experimental.pallas import tpu as pltpu

_LANE = 128
_TARGET_BLOCK_BYTES = 2 << 20    # ~2 MiB per pipelined block (6 live buffers ~12 MiB total)
_VMEM_LIMIT_BYTES = 48 << 20     # safe on v5e/v6e (128 MiB VMEM) and v7x (64 MiB / TC)


def _sublane_min(dtype):
    # 8 rows per vreg tile for 4-byte dtypes, 16 for bf16/f16, 32 for 1-byte dtypes.
    return max(8, 32 // jnp.dtype(dtype).itemsize)


def _pick_tm(rows, sub, row_bytes):
    """Largest multiple of `sub` row tile that (a) targets ~2 MiB blocks, (b) <= rows."""
    tm = (_TARGET_BLOCK_BYTES // max(row_bytes, 1)) // sub * sub
    tm = max(tm, sub)
    if rows >= sub:
        tm = min(tm, (rows // sub) * sub)   # never exceed the row extent
    else:
        tm = rows                            # tiny input: full-extent block
    return tm


def _pick_tn(h):
    """Largest multiple of 128 that divides H, capped at 2048 lanes."""
    tn = min(h, 2048)
    tn = (tn // _LANE) * _LANE
    while h % tn != 0:
        tn -= _LANE
    return tn


def _swiglu_split_kernel(out_ref, gate_ref, o_ref):
    # out_ref/gate_ref/o_ref: (tm, tn) tiles. Compute silu in f32, cast back.
    g = gate_ref[...].astype(jnp.float32)
    silu = g * jax.nn.sigmoid(g)
    o_ref[...] = (out_ref[...].astype(jnp.float32) * silu).astype(o_ref.dtype)


def _swiglu_fused_kernel(x_ref, o_ref):
    # Fallback for small / non-lane-aligned H: x_ref (tm, 2H), o_ref (tm, H).
    h = o_ref.shape[-1]
    out = x_ref[:, :h].astype(jnp.float32)
    g = x_ref[:, h:].astype(jnp.float32)
    silu = g * jax.nn.sigmoid(g)
    o_ref[...] = (out * silu).astype(o_ref.dtype)


def swiglu(x):
    """SwiGLU over the last axis. x: (..., 2*H) -> (..., H)."""
    *lead, two_h = x.shape
    assert two_h % 2 == 0, "last dim must be even for chunk(2)"
    h = two_h // 2
    rows = 1
    for d in lead:
        rows *= d
    x2d = x.reshape(rows, two_h)

    itemsize = jnp.dtype(x.dtype).itemsize
    sub = _sublane_min(x.dtype)

    if h % _LANE == 0:
        # Lane-aligned: two input streams (out half / gate half), 2D tiling over (rows, H).
        tn = _pick_tn(h)
        tm = _pick_tm(rows, sub, tn * itemsize)
        n_h_blocks = h // tn
        grid = (pl.cdiv(rows, tm), n_h_blocks)

        def out_index_map(i, j):
            return (i, j)

        def gate_index_map(i, j):
            return (i, j + n_h_blocks)   # same row block, channel block shifted by H

        out2d = pl.pallas_call(
            _swiglu_split_kernel,
            out_shape=jax.ShapeDtypeStruct((rows, h), x.dtype),
            grid=grid,
            in_specs=[
                pl.BlockSpec((tm, tn), out_index_map),    # "out" half of x
                pl.BlockSpec((tm, tn), gate_index_map),   # "gate" half of x
            ],
            out_specs=pl.BlockSpec((tm, tn), out_index_map),
            compiler_params=pltpu.CompilerParams(
                dimension_semantics=("parallel", "parallel"),
                vmem_limit_bytes=_VMEM_LIMIT_BYTES,
            ),
        )(x2d, x2d)
    else:
        # Small / unaligned H: whole channel axis per block, tile rows only.
        tm = _pick_tm(rows, sub, two_h * itemsize)
        grid = (pl.cdiv(rows, tm),)
        out2d = pl.pallas_call(
            _swiglu_fused_kernel,
            out_shape=jax.ShapeDtypeStruct((rows, h), x.dtype),
            grid=grid,
            in_specs=[pl.BlockSpec((tm, two_h), lambda i: (i, 0))],
            out_specs=pl.BlockSpec((tm, h), lambda i: (i, 0)),
            compiler_params=pltpu.CompilerParams(
                dimension_semantics=("parallel",),
                vmem_limit_bytes=_VMEM_LIMIT_BYTES,
            ),
        )(x2d)

    return out2d.reshape(*lead, h)


def swiglu_ref(x):
    out, gate = jnp.split(x, 2, axis=-1)
    return out * (gate * jax.nn.sigmoid(gate))


if __name__ == "__main__":
    key = jax.random.PRNGKey(0)
    k1, k2, k3 = jax.random.split(key, 3)

    # 1) Small, unaligned-H case matching the module's toy shape: (2, 8, 64) f32 -> (2, 8, 32).
    x_small = jax.random.normal(k1, (2, 8, 64), dtype=jnp.float32)
    y = swiglu(x_small)
    jax.block_until_ready(y)
    y_ref = swiglu_ref(x_small)
    assert y.shape == (2, 8, 32), y.shape
    assert jnp.allclose(y, y_ref, atol=1e-5, rtol=1e-5), "mismatch (small/unaligned) vs reference"

    # 2) Lane-aligned case exercising the two-stream, 2D-tiled path: (2, 128, 512) f32.
    x_aligned = jax.random.normal(k2, (2, 128, 512), dtype=jnp.float32)
    y2 = swiglu(x_aligned)
    jax.block_until_ready(y2)
    assert jnp.allclose(y2, swiglu_ref(x_aligned), atol=1e-5, rtol=1e-5), \
        "mismatch (aligned f32) vs reference"

    # 3) bf16 with a non-divisible row count (dtype-aware tm=16 + partial last row block).
    x_bf16 = jax.random.normal(k3, (3, 100, 256), dtype=jnp.bfloat16)
    y3 = swiglu(x_bf16)
    jax.block_until_ready(y3)
    ref3 = swiglu_ref(x_bf16.astype(jnp.float32)).astype(jnp.bfloat16)
    assert y3.shape == (3, 100, 128), y3.shape
    assert jnp.allclose(y3.astype(jnp.float32), ref3.astype(jnp.float32),
                        atol=5e-2, rtol=5e-2), "mismatch (bf16) vs reference"

    print("KERNEL_OK")
</pallas_src>

<mosaic_0001>
module attributes {stable_mosaic.version = 11 : i64} {
  func.func @_swiglu_fused_kernel(%arg0: i32, %arg1: memref<16x64xf32, #tpu.memory_space<vmem>>, %arg2: memref<16x32xf32, #tpu.memory_space<vmem>>) attributes {dimension_semantics = [#tpu.dimension_semantics<parallel>], iteration_bounds = array<i64: 1>, scalar_prefetch = 0 : i64, scratch_operands = 0 : i64, tpu.core_type = #tpu.core_type<tc>, window_params = [{transform_indices = @transform_0, window_bounds = array<i64: 16, 64>}, {transform_indices = @transform_1, window_bounds = array<i64: 16, 32>}]} {
    %c0 = arith.constant 0 : index
    %c0_0 = arith.constant 0 : index
    %0 = vector.load %arg1[%c0, %c0_0] : memref<16x64xf32, #tpu.memory_space<vmem>>, vector<16x32xf32>
    %c0_1 = arith.constant 0 : index
    %c32 = arith.constant 32 : index
    %1 = vector.load %arg1[%c0_1, %c32] : memref<16x64xf32, #tpu.memory_space<vmem>>, vector<16x32xf32>
    %2 = arith.negf %1 : vector<16x32xf32>
    %3 = math.exp %2 : vector<16x32xf32>
    %cst = arith.constant 1.000000e+00 : f32
    %4 = vector.broadcast %cst : f32 to vector<16x32xf32>
    %5 = arith.addf %4, %3 : vector<16x32xf32>
    %6 = arith.divf %4, %5 : vector<16x32xf32>
    %7 = arith.mulf %1, %6 : vector<16x32xf32>
    %8 = arith.mulf %0, %7 : vector<16x32xf32>
    %c0_2 = arith.constant 0 : index
    %c0_3 = arith.constant 0 : index
    %9 = vector.load %arg2[%c0_2, %c0_3] : memref<16x32xf32, #tpu.memory_space<vmem>>, vector<16x32xf32>
    tpu.vector_store %arg2[%c0_2, %c0_3], %8 {strides = array<i32>} : memref<16x32xf32, #tpu.memory_space<vmem>>, vector<16x32xf32>,
    return
  }
  func.func @transform_0(%arg0: i32) -> (i32, i32) {
    %c0_i32 = arith.constant 0 : i32
    %c0_i32_0 = arith.constant 0 : i32
    return %arg0, %c0_i32 : i32, i32
  }
  func.func @transform_1(%arg0: i32) -> (i32, i32) {
    %c0_i32 = arith.constant 0 : i32
    %c0_i32_0 = arith.constant 0 : i32
    return %arg0, %c0_i32 : i32, i32
  }
}

</mosaic_0001>

<llo_original>
// kernel: tpu_custom_call.1
$region0: #{tpu_custom_call.1}
  #allocation0 [shape = 'u32[]', space=smem, size = 0x4, offset = 0x4, fixed_abs, tag = 'smem constant byte address 0x4 - core index']
  #allocation1 [shape = 'u32[72,128]{1,0:T(1,128)}', space=vmem, size = 0x9000, scoped, tag = 'internal scratch']
  %s0 = inlined_call_operand.hbm [shape: f32[16,64], index: 0, kind: input, shape index: {}]
  %s1 = inlined_call_operand.hbm [shape: f32[16,32], index: 1, kind: output, shape index: {}]
  %s2 = sld [smem:[#allocation0]]
  $region18: #{tpu_custom_call.1} parent=0
    _
  %s4 = ssub.s32 1, %s2
  %s5 = scalar_select 0, %s4, %s2
  $region1: #{tpu_custom_call.1} parent=0
    #allocation2 [shape = 'u8[8192]{0}', space=vmem, size = 0x2000, scoped, tag = 'input window, operand 0, single buffered']
    #allocation3 [shape = 's32[1]{0}', space=sflag, size = 0x4, scoped, tag = 'scoped memory for tpu_custom_call.1']
    #allocation4 [shape = 's32[1]{0}', space=sflag, size = 0x4, scoped, tag = 'scoped memory for tpu_custom_call.1']
    #allocation5 [shape = 'u8[8192]{0}', space=vmem, size = 0x2000, scoped, tag = 'output window, operand 0, single buffered']
    %6 = vsyncpa [#allocation3], 0
    %7 = vsyncpa [#allocation4], 0
    // Predicated region
    $region2: #{tpu_custom_call.1} parent=1 // pred_check
      _
    $region3: #{tpu_custom_call.1} parent=1 // pred_check_branch
      %9 = sbr.rel (0) target = $region5
    $region4: #{tpu_custom_call.1} parent=1 // pred_region
      %11 = vsyncadd [#allocation3], 0
      %s12 = sshll.u32 %s0, 4
      %s13 = int_to_ptr.hbm [resolvable:$true] %s12
      %s14 = sshll.u32 [#allocation2], 4
      %s15 = int_to_ptr.vmem [resolvable:$true] %s14
      %20 = dma.hbm_to_vmem [thread:$0]  %s13, 256, %s15, [#allocation3], 128, 128, 8
    $region5: #{tpu_custom_call.1} parent=1 // pred_fallthru
      _
    // Predicated region
    $region6: #{tpu_custom_call.1} parent=1 // pred_check
      _
    $region7: #{tpu_custom_call.1} parent=1 // pred_check_branch
      %22 = sbr.rel (0) target = $region9
    $region8: #{tpu_custom_call.1} parent=1 // pred_region
      %24 = dma.done [#allocation3], 256
    $region9: #{tpu_custom_call.1} parent=1 // pred_fallthru
      _
    %v25 = vld [vmem:[#allocation2] sm:$0xff]
    %v26 = vld [vmem:[#allocation2 + $0x8] sm:$0xff]
    %v27 = vxor.u32 %v25, 2147483648
    %v28 = vxor.u32 %v26, 2147483648
    %v29 = vmul.f32 %v27, 1.442695
    %v30 = vpow.pop %v29
    %v31 = vmul.f32 %v28, 1.442695
    %v32 = vpow.pop %v31
    %v33 = vadd.f32 %v30, 1.0
    %v34 = vadd.f32 %v32, 1.0
    %v35 = vrcp.pop %v33
    %v36 = vmul.f32 %v33, %v35
    %v37 = vsub.f32 1.0, %v36
    %v38 = vmul.f32 %v35, %v37
    %v39 = vadd.f32 %v35, %v38
    %vm40 = vweird.f32 %v33
    %vm41 = vweird.f32 %v35
    %vm42 = vmor %vm40, %vm41
    %v43 = vsel %vm42, %v35, %v39
    %v44 = vand.u32 2147483647, %v33
    %vm45 = vcmp.eq.f32.partialorder %v44, 8.507059e+37
    %v46 = vand.u32 %v33, 2147483648
    %v47 = vor.u32 1.1754944e-38, %v46
    %v48 = vsel %vm45, %v47, %v43
    %v49 = vmul.f32 1.0, %v48
    %v50 = vrcp.pop %v34
    %v51 = vmul.f32 %v34, %v50
    %v52 = vsub.f32 1.0, %v51
    %v53 = vmul.f32 %v50, %v52
    %v54 = vadd.f32 %v50, %v53
    %vm55 = vweird.f32 %v34
    %vm56 = vweird.f32 %v50
    %vm57 = vmor %vm55, %vm56
    %v58 = vsel %vm57, %v50, %v54
    %v59 = vand.u32 2147483647, %v34
    %vm60 = vcmp.eq.f32.partialorder %v59, 8.507059e+37
    %v61 = vand.u32 %v34, 2147483648
    %v62 = vor.u32 1.1754944e-38, %v61
    %v63 = vsel %vm60, %v62, %v58
    %v64 = vmul.f32 1.0, %v63
    %v65 = vmul.f32 %v25, %v49
    %v66 = vmul.f32 %v26, %v64
    %69 = vrot.lane.b32.xlu0 %v65, 96
    %v70 = vpop.permute.xlu0 %69
    %71 = vrot.lane.b32.xlu0 %v66, 96
    %v72 = vpop.permute.xlu0 %71
    %v75 = vmul.f32 %v25, %v70
    %v76 = vmul.f32 %v26, %v72
    %vm77 = vcmask 261120
    %78 = vst.msk [vmem:[#allocation5] sm:$0xff] %vm77, %v75
    %79 = vst.msk [vmem:[#allocation5 + $0x8] sm:$0xff] %vm77, %v76
    // Predicated region
    $region10: #{tpu_custom_call.1} parent=1 // pred_check
      _
    $region11: #{tpu_custom_call.1} parent=1 // pred_check_branch
      %81 = sbr.rel (0) target = $region13
    $region12: #{tpu_custom_call.1} parent=1 // pred_region
      %83 = vsyncadd [#allocation4], 0
      %s84 = sshll.u32 [#allocation5], 4
      %s85 = int_to_ptr.vmem [resolvable:$true] %s84
      %s86 = sshll.u32 %s1, 4
      %s87 = int_to_ptr.hbm [resolvable:$true] %s86
      %92 = dma.vmem_to_hbm [thread:$0]  %s85, 256, %s87, [#allocation4], 128, 128, 8
    $region13: #{tpu_custom_call.1} parent=1 // pred_fallthru
      _
    // Predicated region
    $region14: #{tpu_custom_call.1} parent=1 // pred_check
      _
    $region15: #{tpu_custom_call.1} parent=1 // pred_check_branch
      %94 = sbr.rel (0) target = $region17
    $region16: #{tpu_custom_call.1} parent=1 // pred_region
      %96 = dma.done [#allocation4], 256
    $region17: #{tpu_custom_call.1} parent=1 // pred_fallthru
      _
    %97 = vsyncpa [#allocation3], 1
    %98 = vsyncpa [#allocation4], 1

</llo_original>
